<compile_context>
chip_gen: v5e
topology: v5e:2x2
jax: 0.10.0
libtpu: 0.0.40
codegen_flags: <defaults>
</compile_context>

<pallas_src>
import jax
import jax.numpy as jnp
from jax.experimental import pallas as pl
from jax.experimental.pallas import tpu as pltpu

LANE = 128
SUBLANE = 8
TILE = LANE * SUBLANE  # 1024 batch lanes = one fully dense (8,128) f32 tile


def _round_up(n, m):
    return ((n + m - 1) // m) * m


def _linear_kernel(x_ref, w_ref, b_ref, o_ref):
    # x_ref: (3, TR, 128) f32 VMEM block (feature-major, sublane+lane dense)
    # w_ref: (3,) f32 SMEM   b_ref: (1,) f32 SMEM
    # o_ref: (TR, 128) f32 VMEM block
    y = (x_ref[0] * w_ref[0]
         + x_ref[1] * w_ref[1]
         + x_ref[2] * w_ref[2]
         + b_ref[0])
    o_ref[...] = y.astype(o_ref.dtype)


def linear_forward(x, weight, bias, *, tb=None,
                   vmem_budget_bytes=12 * 1024 * 1024):
    """Pallas equivalent of nn.Linear(3, 1) forward.

    x:      (B, 3) float32
    weight: (1, 3) float32
    bias:   (1,)   float32
    returns (B, 1) float32
    """
    B, in_f = x.shape
    out_f = weight.shape[0]
    assert in_f == 3 and out_f == 1
    if B == 0:
        return jnp.zeros((0, 1), jnp.float32)

    # Pad batch only to one dense (8,128) tile group (never to a multiple of tb).
    B_pad = _round_up(B, TILE)
    R = B_pad // LANE  # rows of 128 batch lanes, multiple of 8

    if tb is None:
        # Double-buffered footprint ~ 2 * (3 + 1) * 4 * tb = 32*tb bytes.
        tb_cap = max(TILE, (vmem_budget_bytes // (32 * TILE)) * TILE)  # ~384K lanes
        # Keep >= ~8 grid steps for large B (2-TC sharding on v7x).
        tb_bal = max(TILE, _round_up(pl.cdiv(B_pad, 8), TILE))
        tb = min(B_pad, tb_cap, tb_bal)
    tb = max(TILE, _round_up(min(tb, B_pad), TILE))
    tr = tb // LANE              # sublane rows per block (multiple of 8)
    nb = pl.cdiv(R, tr)          # ragged last block handled by Pallas

    # Explicit scoped-VMEM limit: ~32*tb double-buffered + headroom.
    vmem_limit = int(min(96 << 20, max(32 << 20, 40 * tb)))

    # Wrapper layout plumbing: pad to B_pad lanes, feature-major, dense tiles.
    x32 = x.astype(jnp.float32)
    if B_pad != B:
        x32 = jnp.pad(x32, ((0, B_pad - B), (0, 0)))
    x_fm = x32.T.reshape(3, R, LANE)          # (3, R, 128)

    w_flat = weight.reshape(-1).astype(jnp.float32)  # (3,)
    b_flat = bias.reshape(-1).astype(jnp.float32)    # (1,)

    y_rows = pl.pallas_call(
        _linear_kernel,
        out_shape=jax.ShapeDtypeStruct((R, LANE), jnp.float32),
        grid=(nb,),
        in_specs=[
            # x: (3, tr, 128) dense block, tiled along the row axis.
            pl.BlockSpec((3, tr, LANE), lambda i: (0, i, 0)),
            # weight / bias: whole arrays resident in SMEM, read as scalars.
            pl.BlockSpec(memory_space=pltpu.MemorySpace.SMEM),
            pl.BlockSpec(memory_space=pltpu.MemorySpace.SMEM),
        ],
        out_specs=pl.BlockSpec((tr, LANE), lambda i: (i, 0)),
        compiler_params=pltpu.CompilerParams(
            dimension_semantics=("parallel",),
            vmem_limit_bytes=vmem_limit),
    )(x_fm, w_flat, b_flat)

    # (R, 128) dense rows -> (B, 1), dropping padded lanes.
    return y_rows.reshape(B_pad)[:B].reshape(B, 1)


if __name__ == "__main__":
    key = jax.random.PRNGKey(0)
    kx, kw, kb, kx2 = jax.random.split(key, 4)

    B, IN, OUT = 8, 3, 1

    # Deterministic parameter init mimicking nn.Linear's default
    # U(-1/sqrt(in_features), 1/sqrt(in_features)).
    bound = 1.0 / jnp.sqrt(jnp.float32(IN))
    weight = jax.random.uniform(kw, (OUT, IN), jnp.float32, -bound, bound)
    bias = jax.random.uniform(kb, (OUT,), jnp.float32, -bound, bound)

    x = jax.random.normal(kx, (B, IN), jnp.float32)

    y = linear_forward(x, weight, bias)
    jax.block_until_ready(y)

    y_ref = x @ weight.T + bias
    assert y.shape == (B, OUT)
    assert jnp.allclose(y, y_ref, atol=1e-5, rtol=1e-5)

    # Second check: non-multiple-of-tile batch with multiple grid steps and a
    # ragged last block (B2=3000 -> R=24 rows, tr=16 -> grid of 2, last block
    # only partially in range).  Exercises padding + the parallel batch grid.
    B2 = 3000
    x2 = jax.random.normal(kx2, (B2, IN), jnp.float32)
    y2 = linear_forward(x2, weight, bias, tb=2048)
    jax.block_until_ready(y2)
    y2_ref = x2 @ weight.T + bias
    assert y2.shape == (B2, OUT)
    assert jnp.allclose(y2, y2_ref, atol=1e-5, rtol=1e-5)

    print("KERNEL_OK")
</pallas_src>

<mosaic_0001>
module attributes {stable_mosaic.version = 11 : i64} {
  func.func @_linear_kernel(%arg0: i32, %arg1: memref<3x8x128xf32, #tpu.memory_space<vmem>>, %arg2: memref<3xf32, #tpu.memory_space<smem>>, %arg3: memref<1xf32, #tpu.memory_space<smem>>, %arg4: memref<8x128xf32, #tpu.memory_space<vmem>>) attributes {dimension_semantics = [#tpu.dimension_semantics<parallel>], iteration_bounds = array<i64: 1>, scalar_prefetch = 0 : i64, scratch_operands = 0 : i64, tpu.core_type = #tpu.core_type<tc>, window_params = [{transform_indices = @transform_0, window_bounds = array<i64: 3, 8, 128>}, {transform_indices = @transform_1, window_bounds = array<i64: 3>}, {transform_indices = @transform_2, window_bounds = array<i64: 1>}, {transform_indices = @transform_3, window_bounds = array<i64: 8, 128>}]} {
    %c0 = arith.constant 0 : index
    %c0_0 = arith.constant 0 : index
    %c0_1 = arith.constant 0 : index
    %0 = vector.load %arg1[%c0, %c0_0, %c0_1] : memref<3x8x128xf32, #tpu.memory_space<vmem>>, vector<1x8x128xf32>
    %1 = vector.shape_cast %0 : vector<1x8x128xf32> to vector<8x128xf32>
    %c0_2 = arith.constant 0 : index
    %2 = memref.load %arg2[%c0_2] : memref<3xf32, #tpu.memory_space<smem>>
    %3 = vector.broadcast %2 : f32 to vector<8x128xf32>
    %4 = arith.mulf %1, %3 : vector<8x128xf32>
    %c1 = arith.constant 1 : index
    %c0_3 = arith.constant 0 : index
    %c0_4 = arith.constant 0 : index
    %5 = vector.load %arg1[%c1, %c0_3, %c0_4] : memref<3x8x128xf32, #tpu.memory_space<vmem>>, vector<1x8x128xf32>
    %6 = vector.shape_cast %5 : vector<1x8x128xf32> to vector<8x128xf32>
    %c1_5 = arith.constant 1 : index
    %7 = memref.load %arg2[%c1_5] : memref<3xf32, #tpu.memory_space<smem>>
    %8 = vector.broadcast %7 : f32 to vector<8x128xf32>
    %9 = arith.mulf %6, %8 : vector<8x128xf32>
    %10 = arith.addf %4, %9 : vector<8x128xf32>
    %c2 = arith.constant 2 : index
    %c0_6 = arith.constant 0 : index
    %c0_7 = arith.constant 0 : index
    %11 = vector.load %arg1[%c2, %c0_6, %c0_7] : memref<3x8x128xf32, #tpu.memory_space<vmem>>, vector<1x8x128xf32>
    %12 = vector.shape_cast %11 : vector<1x8x128xf32> to vector<8x128xf32>
    %c2_8 = arith.constant 2 : index
    %13 = memref.load %arg2[%c2_8] : memref<3xf32, #tpu.memory_space<smem>>
    %14 = vector.broadcast %13 : f32 to vector<8x128xf32>
    %15 = arith.mulf %12, %14 : vector<8x128xf32>
    %16 = arith.addf %10, %15 : vector<8x128xf32>
    %c0_9 = arith.constant 0 : index
    %17 = memref.load %arg3[%c0_9] : memref<1xf32, #tpu.memory_space<smem>>
    %18 = vector.broadcast %17 : f32 to vector<8x128xf32>
    %19 = arith.addf %16, %18 : vector<8x128xf32>
    %c0_10 = arith.constant 0 : index
    %c0_11 = arith.constant 0 : index
    %20 = vector.load %arg4[%c0_10, %c0_11] : memref<8x128xf32, #tpu.memory_space<vmem>>, vector<8x128xf32>
    tpu.vector_store %arg4[%c0_10, %c0_11], %19 {strides = array<i32>} : memref<8x128xf32, #tpu.memory_space<vmem>>, vector<8x128xf32>,
    return
  }
  func.func @transform_0(%arg0: i32) -> (i32, i32, i32) {
    %c0_i32 = arith.constant 0 : i32
    %c0_i32_0 = arith.constant 0 : i32
    %c0_i32_1 = arith.constant 0 : i32
    return %c0_i32, %arg0, %c0_i32_0 : i32, i32, i32
  }
  func.func @transform_1(%arg0: i32) -> i32 {
    %c0_i32 = arith.constant 0 : i32
    %c0_i32_0 = arith.constant 0 : i32
    return %c0_i32 : i32
  }
  func.func @transform_2(%arg0: i32) -> i32 {
    %c0_i32 = arith.constant 0 : i32
    %c0_i32_0 = arith.constant 0 : i32
    return %c0_i32 : i32
  }
  func.func @transform_3(%arg0: i32) -> (i32, i32) {
    %c0_i32 = arith.constant 0 : i32
    %c0_i32_0 = arith.constant 0 : i32
    return %arg0, %c0_i32 : i32, i32
  }
}

</mosaic_0001>

<llo_original>
// kernel: tpu_custom_call.1
$region0: #{tpu_custom_call.1}
  #allocation0 [shape = 'u32[]', space=smem, size = 0x4, offset = 0x4, fixed_abs, tag = 'smem constant byte address 0x4 - core index']
  #allocation1 [shape = 'u32[72,128]{1,0:T(1,128)}', space=vmem, size = 0x9000, scoped, tag = 'internal scratch']
  #allocation2 [shape = 'f32[1]{0:T(128)S(6)}', space=smem, size = 0x200, scoped, tag = 'scoped memory for tpu_custom_call.1']
  %s0 = inlined_call_operand.hbm [shape: f32[3,8,128], index: 0, kind: input, shape index: {}]
  %s1 = inlined_call_operand.vmem [shape: f32[3], index: 1, kind: input, shape index: {}]
  %s2 = inlined_call_operand.<no memory space> [shape: f32[1], index: 2, kind: input, shape index: {}]
  %s3 = inlined_call_operand.hbm [shape: f32[8,128], index: 3, kind: output, shape index: {}]
  %s4 = sld [smem:[#allocation0]]
  $region30: #{tpu_custom_call.1} parent=0
    _
  %s6 = ssub.s32 1, %s4
  %s7 = scalar_select 0, %s6, %s4
  %8 = sst [smem:[#allocation2]] %s2
  $region1: #{tpu_custom_call.1} parent=0
    #allocation3 [shape = 'u8[12288]{0}', space=vmem, size = 0x3000, scoped, tag = 'input window, operand 0, single buffered']
    #allocation4 [shape = 's32[1]{0}', space=sflag, size = 0x4, scoped, tag = 'scoped memory for tpu_custom_call.1']
    #allocation5 [shape = 's32[1]{0}', space=sflag, size = 0x4, scoped, tag = 'scoped memory for tpu_custom_call.1']
    #allocation6 [shape = 's32[1]{0}', space=sflag, size = 0x4, scoped, tag = 'scoped memory for tpu_custom_call.1']
    #allocation7 [shape = 'u8[512]{0}', space=smem, size = 0x200, scoped, tag = 'input window, operand 1, single buffered']
    #allocation8 [shape = 'u8[4096]{0}', space=vmem, size = 0x1000, scoped, tag = 'output window, operand 0, single buffered']
    %9 = vsyncpa [#allocation4], 0
    %10 = vsyncpa [#allocation6], 0
    %11 = vsyncpa [#allocation5], 0
    // Predicated region
    $region2: #{tpu_custom_call.1} parent=1 // pred_check
      _
    $region3: #{tpu_custom_call.1} parent=1 // pred_check_branch
      %13 = sbr.rel (0) target = $region5
    $region4: #{tpu_custom_call.1} parent=1 // pred_region
      %15 = vsyncadd [#allocation4], 0
      %s16 = sshll.u32 %s0, 4
      %s17 = int_to_ptr.hbm [resolvable:$true] %s16
      %s18 = sshll.u32 [#allocation3], 4
      %s19 = int_to_ptr.vmem [resolvable:$true] %s18
      %24 = dma.hbm_to_vmem [thread:$0]  %s17, 384, %s19, [#allocation4], 128, 128, 8
    $region5: #{tpu_custom_call.1} parent=1 // pred_fallthru
      _
    // Predicated region
    $region6: #{tpu_custom_call.1} parent=1 // pred_check
      _
    $region7: #{tpu_custom_call.1} parent=1 // pred_check_branch
      %26 = sbr.rel (0) target = $region9
    $region8: #{tpu_custom_call.1} parent=1 // pred_region
      %28 = vsyncadd [#allocation6], 0
      %s30 = sshll.u32 %s1, 4
      %s31 = int_to_ptr.vmem [resolvable:$true] %s30
      %33 = dma.vmem_to_smem %s31, 16, [#allocation7], [#allocation6]
    $region9: #{tpu_custom_call.1} parent=1 // pred_fallthru
      _
    // Predicated region
    $region10: #{tpu_custom_call.1} parent=1 // pred_check
      _
    $region11: #{tpu_custom_call.1} parent=1 // pred_check_branch
      %35 = sbr.rel (0) target = $region13
    $region12: #{tpu_custom_call.1} parent=1 // pred_region
      _
    $region13: #{tpu_custom_call.1} parent=1 // pred_fallthru
      _
    // Predicated region
    $region14: #{tpu_custom_call.1} parent=1 // pred_check
      _
    $region15: #{tpu_custom_call.1} parent=1 // pred_check_branch
      %37 = sbr.rel (0) target = $region17
    $region16: #{tpu_custom_call.1} parent=1 // pred_region
      %39 = dma.done [#allocation4], 384
    $region17: #{tpu_custom_call.1} parent=1 // pred_fallthru
      _
    // Predicated region
    $region18: #{tpu_custom_call.1} parent=1 // pred_check
      _
    $region19: #{tpu_custom_call.1} parent=1 // pred_check_branch
      %41 = sbr.rel (0) target = $region21
    $region20: #{tpu_custom_call.1} parent=1 // pred_region
      %43 = dma.done [#allocation6], 16
    $region21: #{tpu_custom_call.1} parent=1 // pred_fallthru
      _
    %44 = sfence
    %v45 = vld [vmem:[#allocation3] sm:$0xff]
    %s46 = sld [smem:[#allocation7]]
    %v47 = vstv %s46
    %v48 = vmul.f32 %v45, %v47
    %s49 = scalar_lea.vmem [#allocation3], 8
    %v50 = vld [vmem:[%s49] sm:$0xff]
    %s51 = sld [smem:[#allocation7 + $0x1]]
    %v52 = vstv %s51
    %v53 = vmul.f32 %v50, %v52
    %v54 = vadd.f32 %v48, %v53
    %s55 = scalar_lea.vmem [#allocation3], 16
    %v56 = vld [vmem:[%s55] sm:$0xff]
    %s57 = sld [smem:[#allocation7 + $0x2]]
    %v58 = vstv %s57
    %v59 = vmul.f32 %v56, %v58
    %v60 = vadd.f32 %v54, %v59
    %s61 = sld [smem:[#allocation2]]
    %v62 = vstv %s61
    %v63 = vadd.f32 %v60, %v62
    %64 = vst [vmem:[#allocation8] sm:$0xff] %v63
    // Predicated region
    $region22: #{tpu_custom_call.1} parent=1 // pred_check
      _
    $region23: #{tpu_custom_call.1} parent=1 // pred_check_branch
      %66 = sbr.rel (0) target = $region25
    $region24: #{tpu_custom_call.1} parent=1 // pred_region
      %68 = vsyncadd [#allocation5], 0
      %s70 = sshll.u32 [#allocation8], 4
      %s71 = int_to_ptr.vmem [resolvable:$true] %s70
      %s72 = sshll.u32 %s3, 4
      %s73 = int_to_ptr.hbm [resolvable:$true] %s72
      %75 = dma.vmem_to_hbm [thread:$0]  %s71, 128, %s73, [#allocation5]
    $region25: #{tpu_custom_call.1} parent=1 // pred_fallthru
      _
    // Predicated region
    $region26: #{tpu_custom_call.1} parent=1 // pred_check
      _
    $region27: #{tpu_custom_call.1} parent=1 // pred_check_branch
      %77 = sbr.rel (0) target = $region29
    $region28: #{tpu_custom_call.1} parent=1 // pred_region
      %79 = dma.done [#allocation5], 128
    $region29: #{tpu_custom_call.1} parent=1 // pred_fallthru
      _
    %80 = vsyncpa [#allocation4], 1
    %81 = vsyncpa [#allocation5], 1
    %82 = vsyncpa [#allocation6], 1

</llo_original>
